<compile_context>
chip_gen: v6e
topology: v6e:2x2x1
jax: 0.10.0
libtpu: 0.0.40
codegen_flags: <defaults>
</compile_context>

<pallas_src>
import math

import jax
import jax.numpy as jnp
from jax.experimental import pallas as pl
from jax.experimental.pallas import tpu as pltpu

# ---------------- model dims (small, consistent with the forward) ------------
B = 2          # batch
S = 8          # sequence length
BS = B * S     # flattened rows
H = 32         # hidden_size
F = 64         # FFN intermediate
VOCAB = 100
NUM_CLASSES = 6

HEAD_OUT = 2 + 3 + NUM_CLASSES   # 11 = det(2) + group(3) + classify(6)
HEAD_PAD = 128                   # lane-dense padded head output width

# rows of the packed [9, BS, H] (pre-broadcast) vector bundle
_BQ, _BK, _BV, _BO, _LN1G, _LN1B, _B2, _LN2G, _LN2B = range(9)


# ---------------------------- Pallas kernel ----------------------------------
def _gelu_tanh(x):
    # TODO(synk): torch nn.GELU defaults to the erf form; tanh approx kept
    # (BERT-style), numeric mismatch ~1e-3.
    c = math.sqrt(2.0 / math.pi)
    return 0.5 * x * (1.0 + jnp.tanh(c * (x + 0.044715 * x * x * x)))


def fused_kernel(ids_ref, mask_ref, tok_ref, pos_ref,
                 wqkv_ref, wo_ref, w1_ref, w2_ref,
                 vech_ref, vecf_ref, wh_ref, bh_ref, bias_ref,
                 out_ref, x_scratch):
    # ---- fused embedding gather: ids scalars in SMEM, table rows in VMEM ----
    for r in range(BS):                       # 16 unrolled dynamic row loads
        tok = ids_ref[r]
        x_scratch[pl.ds(r, 1), :] = tok_ref[pl.ds(tok, 1), :]
    x2d = x_scratch[...] + pos_ref[...]       # [BS, H] f32 (pos pre-tiled)

    # ---- fused QKV projection: bf16 operands, f32 accumulate ----
    qkv = jnp.dot(x2d.astype(jnp.bfloat16), wqkv_ref[...],
                  preferred_element_type=jnp.float32)          # [BS, 3H]
    q = qkv[:, 0 * H:1 * H] + vech_ref[_BQ]   # 1/sqrt(H) folded into Wq / bq
    k = qkv[:, 1 * H:2 * H] + vech_ref[_BK]
    v = qkv[:, 2 * H:3 * H] + vech_ref[_BV]

    # ---- flat 2-D attention with block-diagonal + padding additive mask ----
    scores = jax.lax.dot_general(q, k, (((1,), (1,)), ((), ())),
                                 preferred_element_type=jnp.float32)  # [BS, BS]
    # bias_ref: 0 within a batch, -1e9 across batches; mask_ref: [1, BS] keys.
    # (All-padded rows yield uniform attention rather than NaN, as before.)
    scores = scores + bias_ref[...] + (mask_ref[...] - 1.0) * 1e9

    m = jnp.max(scores, axis=-1, keepdims=True)
    p = jnp.exp(scores - m)
    denom = jnp.sum(p, axis=-1, keepdims=True)
    attn = p * pl.reciprocal(denom, approx=True)               # EUP reciprocal

    ctx = jnp.dot(attn, v, preferred_element_type=jnp.float32)            # [BS, H]
    attn_out = (jnp.dot(ctx.astype(jnp.bfloat16), wo_ref[...],
                        preferred_element_type=jnp.float32) + vech_ref[_BO])

    def layer_norm(y, g, b):
        mu = jnp.mean(y, axis=-1, keepdims=True)
        var = jnp.mean((y - mu) * (y - mu), axis=-1, keepdims=True)
        return (y - mu) * jax.lax.rsqrt(var + 1e-12) * g + b

    h1 = layer_norm(x2d + attn_out, vech_ref[_LN1G], vech_ref[_LN1B])

    # ---- FFN: 2-D bf16 matmuls, f32 elementwise ----
    ff = (jnp.dot(h1.astype(jnp.bfloat16), w1_ref[...],
                  preferred_element_type=jnp.float32) + vecf_ref[...])
    ff = _gelu_tanh(ff)
    ff = (jnp.dot(ff.astype(jnp.bfloat16), w2_ref[...],
                  preferred_element_type=jnp.float32) + vech_ref[_B2])

    h2 = layer_norm(h1 + ff, vech_ref[_LN2G], vech_ref[_LN2B])

    # ---- fused (concatenated, lane-padded) heads for ALL rows:
    #      [16,128] unmasked lane-dense store; CLS rows picked in the wrapper ----
    out_ref[...] = (jnp.dot(h2.astype(jnp.bfloat16), wh_ref[...],
                            preferred_element_type=jnp.float32) + bh_ref[...])


# ---------------------------- wrapper -----------------------------------------
_VMEM = pl.BlockSpec(memory_space=pltpu.MemorySpace.VMEM)
_SMEM = pl.BlockSpec(memory_space=pltpu.MemorySpace.SMEM)


def run_fused(ids_flat, mask_flat, p):
    args = (ids_flat, mask_flat,
            p['tok_emb'], p['pos2d'],
            p['w_qkv'], p['w_o'], p['w1'], p['w2'],
            p['vec_h'], p['vec_f'],
            p['w_heads'], p['b_heads'], p['attn_bias'])
    return pl.pallas_call(
        fused_kernel,
        out_shape=jax.ShapeDtypeStruct((BS, HEAD_PAD), jnp.float32),
        in_specs=[_SMEM] + [_VMEM] * (len(args) - 1),
        out_specs=_VMEM,
        scratch_shapes=[pltpu.VMEM((BS, H), jnp.float32)],
    )(*args)


@jax.jit
def multi_task_forward(input_ids, attention_mask, params):
    ids_flat = input_ids.reshape(BS).astype(jnp.int32)              # -> SMEM
    mask_flat = attention_mask.astype(jnp.float32).reshape(1, BS)   # key mask

    logits_all = run_fused(ids_flat, mask_flat, params)             # [BS, 128]

    pooled_logits = logits_all[::S]                                 # CLS rows -> [B, 128]
    logits_detection = pooled_logits[:, 0:2]
    logits_group = pooled_logits[:, 2:5]
    logits_classify = pooled_logits[:, 5:5 + NUM_CLASSES]
    return [logits_detection, logits_group, logits_classify]


# ---------------------------- parameter init ----------------------------------
def init_params(key):
    ks = jax.random.split(key, 16)
    s = 0.02

    def nrm(k, shape):
        return jax.random.normal(k, shape, dtype=jnp.float32) * s

    tok_emb = nrm(ks[0], (VOCAB, H))                      # stays f32 (exact gather)
    pos_emb = nrm(ks[1], (S, H))
    pos2d = jnp.tile(pos_emb, (B, 1))                     # pre-tiled [BS, H]

    # attention / FFN weights ([in, out] layout), attention scale folded into Wq
    scale = 1.0 / math.sqrt(H)
    wq = nrm(ks[2], (H, H)) * scale
    wk, wv = nrm(ks[3], (H, H)), nrm(ks[4], (H, H))
    w_qkv = jnp.concatenate([wq, wk, wv], axis=1).astype(jnp.bfloat16)   # [H, 3H]
    w_o = nrm(ks[5], (H, H)).astype(jnp.bfloat16)
    w1 = nrm(ks[6], (H, F)).astype(jnp.bfloat16)
    w2 = nrm(ks[7], (F, H)).astype(jnp.bfloat16)

    # packed per-feature vectors, pre-broadcast to [9, BS, H]
    # rows = bq(*scale), bk, bv, bo, ln1g, ln1b, b2, ln2g, ln2b
    vec9 = jnp.zeros((9, H), jnp.float32)
    vec9 = vec9.at[_LN1G].set(1.0).at[_LN2G].set(1.0)     # LN gammas = 1
    vec_h = jnp.broadcast_to(vec9[:, None, :], (9, BS, H)).astype(jnp.float32)
    vec_f = jnp.zeros((BS, F), jnp.float32)               # b1 pre-broadcast

    # three heads fused: [H,2] ++ [H,3] ++ [H,6] -> [H,11] -> pad to [H,128]
    wd = nrm(ks[8], (H, 2))
    wg = nrm(ks[9], (H, 3))
    wc = nrm(ks[10], (H, NUM_CLASSES))
    w_heads = jnp.pad(jnp.concatenate([wd, wg, wc], axis=1),
                      ((0, 0), (0, HEAD_PAD - HEAD_OUT))).astype(jnp.bfloat16)
    b_heads = jnp.zeros((BS, HEAD_PAD), jnp.float32)      # pre-broadcast

    # static block-diagonal additive attention bias (0 same batch, -1e9 cross)
    row_b = jnp.arange(BS)[:, None] // S
    col_b = jnp.arange(BS)[None, :] // S
    attn_bias = jnp.where(row_b == col_b, 0.0, -1e9).astype(jnp.float32)

    return {'tok_emb': tok_emb, 'pos2d': pos2d,
            'w_qkv': w_qkv, 'w_o': w_o, 'w1': w1, 'w2': w2,
            'vec_h': vec_h, 'vec_f': vec_f,
            'w_heads': w_heads, 'b_heads': b_heads,
            'attn_bias': attn_bias}


# ---------------------------- main ---------------------------------------------
if __name__ == "__main__":
    key = jax.random.PRNGKey(0)
    k_param, k_ids = jax.random.split(key)

    params = init_params(k_param)

    input_ids = jax.random.randint(k_ids, (B, S), 0, VOCAB, dtype=jnp.int32)
    attention_mask = jnp.array(
        [[1, 1, 1, 1, 1, 1, 1, 1],
         [1, 1, 1, 1, 1, 0, 0, 0]], dtype=jnp.int32)

    logits_detection, logits_group, logits_classify = multi_task_forward(
        input_ids, attention_mask, params)

    jax.block_until_ready((logits_detection, logits_group, logits_classify))

    assert logits_detection.shape == (B, 2)
    assert logits_group.shape == (B, 3)
    assert logits_classify.shape == (B, NUM_CLASSES)
    assert jnp.all(jnp.isfinite(logits_detection))
    assert jnp.all(jnp.isfinite(logits_group))
    assert jnp.all(jnp.isfinite(logits_classify))

    print("KERNEL_OK")
</pallas_src>

<mosaic_0001>
module attributes {stable_mosaic.version = 11 : i64} {
  func.func @fused_kernel(%arg0: memref<16xi32, #tpu.memory_space<smem>>, %arg1: memref<1x16xf32, #tpu.memory_space<vmem>>, %arg2: memref<100x32xf32, #tpu.memory_space<vmem>>, %arg3: memref<16x32xf32, #tpu.memory_space<vmem>>, %arg4: memref<32x96xbf16, #tpu.memory_space<vmem>>, %arg5: memref<32x32xbf16, #tpu.memory_space<vmem>>, %arg6: memref<32x64xbf16, #tpu.memory_space<vmem>>, %arg7: memref<64x32xbf16, #tpu.memory_space<vmem>>, %arg8: memref<9x16x32xf32, #tpu.memory_space<vmem>>, %arg9: memref<16x64xf32, #tpu.memory_space<vmem>>, %arg10: memref<32x128xbf16, #tpu.memory_space<vmem>>, %arg11: memref<16x128xf32, #tpu.memory_space<vmem>>, %arg12: memref<16x16xf32, #tpu.memory_space<vmem>>, %arg13: memref<16x128xf32, #tpu.memory_space<vmem>>, %arg14: memref<16x32xf32, #tpu.memory_space<vmem>>) attributes {dimension_semantics = [], scalar_prefetch = 0 : i64, scratch_operands = 1 : i64, tpu.core_type = #tpu.core_type<tc>} {
    %c0 = arith.constant 0 : index
    %0 = memref.load %arg0[%c0] : memref<16xi32, #tpu.memory_space<smem>>
    %1 = arith.index_cast %0 : i32 to index
    %c0_0 = arith.constant 0 : index
    %2 = vector.load %arg2[%1, %c0_0] : memref<100x32xf32, #tpu.memory_space<vmem>>, vector<1x32xf32>
    %c0_1 = arith.constant 0 : index
    %c0_2 = arith.constant 0 : index
    %3 = vector.load %arg14[%c0_1, %c0_2] : memref<16x32xf32, #tpu.memory_space<vmem>>, vector<1x32xf32>
    tpu.vector_store %arg14[%c0_1, %c0_2], %2 {strides = array<i32>} : memref<16x32xf32, #tpu.memory_space<vmem>>, vector<1x32xf32>,
    %c1 = arith.constant 1 : index
    %4 = memref.load %arg0[%c1] : memref<16xi32, #tpu.memory_space<smem>>
    %5 = arith.index_cast %4 : i32 to index
    %c0_3 = arith.constant 0 : index
    %6 = vector.load %arg2[%5, %c0_3] : memref<100x32xf32, #tpu.memory_space<vmem>>, vector<1x32xf32>
    %c1_4 = arith.constant 1 : index
    %c0_5 = arith.constant 0 : index
    %7 = vector.load %arg14[%c1_4, %c0_5] : memref<16x32xf32, #tpu.memory_space<vmem>>, vector<1x32xf32>
    tpu.vector_store %arg14[%c1_4, %c0_5], %6 {strides = array<i32>} : memref<16x32xf32, #tpu.memory_space<vmem>>, vector<1x32xf32>,
    %c2 = arith.constant 2 : index
    %8 = memref.load %arg0[%c2] : memref<16xi32, #tpu.memory_space<smem>>
    %9 = arith.index_cast %8 : i32 to index
    %c0_6 = arith.constant 0 : index
    %10 = vector.load %arg2[%9, %c0_6] : memref<100x32xf32, #tpu.memory_space<vmem>>, vector<1x32xf32>
    %c2_7 = arith.constant 2 : index
    %c0_8 = arith.constant 0 : index
    %11 = vector.load %arg14[%c2_7, %c0_8] : memref<16x32xf32, #tpu.memory_space<vmem>>, vector<1x32xf32>
    tpu.vector_store %arg14[%c2_7, %c0_8], %10 {strides = array<i32>} : memref<16x32xf32, #tpu.memory_space<vmem>>, vector<1x32xf32>,
    %c3 = arith.constant 3 : index
    %12 = memref.load %arg0[%c3] : memref<16xi32, #tpu.memory_space<smem>>
    %13 = arith.index_cast %12 : i32 to index
    %c0_9 = arith.constant 0 : index
    %14 = vector.load %arg2[%13, %c0_9] : memref<100x32xf32, #tpu.memory_space<vmem>>, vector<1x32xf32>
    %c3_10 = arith.constant 3 : index
    %c0_11 = arith.constant 0 : index
    %15 = vector.load %arg14[%c3_10, %c0_11] : memref<16x32xf32, #tpu.memory_space<vmem>>, vector<1x32xf32>
    tpu.vector_store %arg14[%c3_10, %c0_11], %14 {strides = array<i32>} : memref<16x32xf32, #tpu.memory_space<vmem>>, vector<1x32xf32>,
    %c4 = arith.constant 4 : index
    %16 = memref.load %arg0[%c4] : memref<16xi32, #tpu.memory_space<smem>>
    %17 = arith.index_cast %16 : i32 to index
    %c0_12 = arith.constant 0 : index
    %18 = vector.load %arg2[%17, %c0_12] : memref<100x32xf32, #tpu.memory_space<vmem>>, vector<1x32xf32>
    %c4_13 = arith.constant 4 : index
    %c0_14 = arith.constant 0 : index
    %19 = vector.load %arg14[%c4_13, %c0_14] : memref<16x32xf32, #tpu.memory_space<vmem>>, vector<1x32xf32>
    tpu.vector_store %arg14[%c4_13, %c0_14], %18 {strides = array<i32>} : memref<16x32xf32, #tpu.memory_space<vmem>>, vector<1x32xf32>,
    %c5 = arith.constant 5 : index
    %20 = memref.load %arg0[%c5] : memref<16xi32, #tpu.memory_space<smem>>
    %21 = arith.index_cast %20 : i32 to index
    %c0_15 = arith.constant 0 : index
    %22 = vector.load %arg2[%21, %c0_15] : memref<100x32xf32, #tpu.memory_space<vmem>>, vector<1x32xf32>
    %c5_16 = arith.constant 5 : index
    %c0_17 = arith.constant 0 : index
    %23 = vector.load %arg14[%c5_16, %c0_17] : memref<16x32xf32, #tpu.memory_space<vmem>>, vector<1x32xf32>
    tpu.vector_store %arg14[%c5_16, %c0_17], %22 {strides = array<i32>} : memref<16x32xf32, #tpu.memory_space<vmem>>, vector<1x32xf32>,
    %c6 = arith.constant 6 : index
    %24 = memref.load %arg0[%c6] : memref<16xi32, #tpu.memory_space<smem>>
    %25 = arith.index_cast %24 : i32 to index
    %c0_18 = arith.constant 0 : index
    %26 = vector.load %arg2[%25, %c0_18] : memref<100x32xf32, #tpu.memory_space<vmem>>, vector<1x32xf32>
    %c6_19 = arith.constant 6 : index
    %c0_20 = arith.constant 0 : index
    %27 = vector.load %arg14[%c6_19, %c0_20] : memref<16x32xf32, #tpu.memory_space<vmem>>, vector<1x32xf32>
    tpu.vector_store %arg14[%c6_19, %c0_20], %26 {strides = array<i32>} : memref<16x32xf32, #tpu.memory_space<vmem>>, vector<1x32xf32>,
    %c7 = arith.constant 7 : index
    %28 = memref.load %arg0[%c7] : memref<16xi32, #tpu.memory_space<smem>>
    %29 = arith.index_cast %28 : i32 to index
    %c0_21 = arith.constant 0 : index
    %30 = vector.load %arg2[%29, %c0_21] : memref<100x32xf32, #tpu.memory_space<vmem>>, vector<1x32xf32>
    %c7_22 = arith.constant 7 : index
    %c0_23 = arith.constant 0 : index
    %31 = vector.load %arg14[%c7_22, %c0_23] : memref<16x32xf32, #tpu.memory_space<vmem>>, vector<1x32xf32>
    tpu.vector_store %arg14[%c7_22, %c0_23], %30 {strides = array<i32>} : memref<16x32xf32, #tpu.memory_space<vmem>>, vector<1x32xf32>,
    %c8 = arith.constant 8 : index
    %32 = memref.load %arg0[%c8] : memref<16xi32, #tpu.memory_space<smem>>
    %33 = arith.index_cast %32 : i32 to index
    %c0_24 = arith.constant 0 : index
    %34 = vector.load %arg2[%33, %c0_24] : memref<100x32xf32, #tpu.memory_space<vmem>>, vector<1x32xf32>
    %c8_25 = arith.constant 8 : index
    %c0_26 = arith.constant 0 : index
    %35 = vector.load %arg14[%c8_25, %c0_26] : memref<16x32xf32, #tpu.memory_space<vmem>>, vector<1x32xf32>
    tpu.vector_store %arg14[%c8_25, %c0_26], %34 {strides = array<i32>} : memref<16x32xf32, #tpu.memory_space<vmem>>, vector<1x32xf32>,
    %c9 = arith.constant 9 : index
    %36 = memref.load %arg0[%c9] : memref<16xi32, #tpu.memory_space<smem>>
    %37 = arith.index_cast %36 : i32 to index
    %c0_27 = arith.constant 0 : index
    %38 = vector.load %arg2[%37, %c0_27] : memref<100x32xf32, #tpu.memory_space<vmem>>, vector<1x32xf32>
    %c9_28 = arith.constant 9 : index
    %c0_29 = arith.constant 0 : index
    %39 = vector.load %arg14[%c9_28, %c0_29] : memref<16x32xf32, #tpu.memory_space<vmem>>, vector<1x32xf32>
    tpu.vector_store %arg14[%c9_28, %c0_29], %38 {strides = array<i32>} : memref<16x32xf32, #tpu.memory_space<vmem>>, vector<1x32xf32>,
    %c10 = arith.constant 10 : index
    %40 = memref.load %arg0[%c10] : memref<16xi32, #tpu.memory_space<smem>>
    %41 = arith.index_cast %40 : i32 to index
    %c0_30 = arith.constant 0 : index
    %42 = vector.load %arg2[%41, %c0_30] : memref<100x32xf32, #tpu.memory_space<vmem>>, vector<1x32xf32>
    %c10_31 = arith.constant 10 : index
    %c0_32 = arith.constant 0 : index
    %43 = vector.load %arg14[%c10_31, %c0_32] : memref<16x32xf32, #tpu.memory_space<vmem>>, vector<1x32xf32>
    tpu.vector_store %arg14[%c10_31, %c0_32], %42 {strides = array<i32>} : memref<16x32xf32, #tpu.memory_space<vmem>>, vector<1x32xf32>,
    %c11 = arith.constant 11 : index
    %44 = memref.load %arg0[%c11] : memref<16xi32, #tpu.memory_space<smem>>
    %45 = arith.index_cast %44 : i32 to index
    %c0_33 = arith.constant 0 : index
    %46 = vector.load %arg2[%45, %c0_33] : memref<100x32xf32, #tpu.memory_space<vmem>>, vector<1x32xf32>
    %c11_34 = arith.constant 11 : index
    %c0_35 = arith.constant 0 : index
    %47 = vector.load %arg14[%c11_34, %c0_35] : memref<16x32xf32, #tpu.memory_space<vmem>>, vector<1x32xf32>
    tpu.vector_store %arg14[%c11_34, %c0_35], %46 {strides = array<i32>} : memref<16x32xf32, #tpu.memory_space<vmem>>, vector<1x32xf32>,
    %c12 = arith.constant 12 : index
    %48 = memref.load %arg0[%c12] : memref<16xi32, #tpu.memory_space<smem>>
    %49 = arith.index_cast %48 : i32 to index
    %c0_36 = arith.constant 0 : index
    %50 = vector.load %arg2[%49, %c0_36] : memref<100x32xf32, #tpu.memory_space<vmem>>, vector<1x32xf32>
    %c12_37 = arith.constant 12 : index
    %c0_38 = arith.constant 0 : index
    %51 = vector.load %arg14[%c12_37, %c0_38] : memref<16x32xf32, #tpu.memory_space<vmem>>, vector<1x32xf32>
    tpu.vector_store %arg14[%c12_37, %c0_38], %50 {strides = array<i32>} : memref<16x32xf32, #tpu.memory_space<vmem>>, vector<1x32xf32>,
    %c13 = arith.constant 13 : index
    %52 = memref.load %arg0[%c13] : memref<16xi32, #tpu.memory_space<smem>>
    %53 = arith.index_cast %52 : i32 to index
    %c0_39 = arith.constant 0 : index
    %54 = vector.load %arg2[%53, %c0_39] : memref<100x32xf32, #tpu.memory_space<vmem>>, vector<1x32xf32>
    %c13_40 = arith.constant 13 : index
    %c0_41 = arith.constant 0 : index
    %55 = vector.load %arg14[%c13_40, %c0_41] : memref<16x32xf32, #tpu.memory_space<vmem>>, vector<1x32xf32>
    tpu.vector_store %arg14[%c13_40, %c0_41], %54 {strides = array<i32>} : memref<16x32xf32, #tpu.memory_space<vmem>>, vector<1x32xf32>,
    %c14 = arith.constant 14 : index
    %56 = memref.load %arg0[%c14] : memref<16xi32, #tpu.memory_space<smem>>
    %57 = arith.index_cast %56 : i32 to index
    %c0_42 = arith.constant 0 : index
    %58 = vector.load %arg2[%57, %c0_42] : memref<100x32xf32, #tpu.memory_space<vmem>>, vector<1x32xf32>
    %c14_43 = arith.constant 14 : index
    %c0_44 = arith.constant 0 : index
    %59 = vector.load %arg14[%c14_43, %c0_44] : memref<16x32xf32, #tpu.memory_space<vmem>>, vector<1x32xf32>
    tpu.vector_store %arg14[%c14_43, %c0_44], %58 {strides = array<i32>} : memref<16x32xf32, #tpu.memory_space<vmem>>, vector<1x32xf32>,
    %c15 = arith.constant 15 : index
    %60 = memref.load %arg0[%c15] : memref<16xi32, #tpu.memory_space<smem>>
    %61 = arith.index_cast %60 : i32 to index
    %c0_45 = arith.constant 0 : index
    %62 = vector.load %arg2[%61, %c0_45] : memref<100x32xf32, #tpu.memory_space<vmem>>, vector<1x32xf32>
    %c15_46 = arith.constant 15 : index
    %c0_47 = arith.constant 0 : index
    %63 = vector.load %arg14[%c15_46, %c0_47] : memref<16x32xf32, #tpu.memory_space<vmem>>, vector<1x32xf32>
    tpu.vector_store %arg14[%c15_46, %c0_47], %62 {strides = array<i32>} : memref<16x32xf32, #tpu.memory_space<vmem>>, vector<1x32xf32>,
    %c0_48 = arith.constant 0 : index
    %c0_49 = arith.constant 0 : index
    %64 = vector.load %arg14[%c0_48, %c0_49] : memref<16x32xf32, #tpu.memory_space<vmem>>, vector<16x32xf32>
    %c0_50 = arith.constant 0 : index
    %c0_51 = arith.constant 0 : index
    %65 = vector.load %arg3[%c0_50, %c0_51] : memref<16x32xf32, #tpu.memory_space<vmem>>, vector<16x32xf32>
    %66 = arith.addf %64, %65 : vector<16x32xf32>
    %67 = arith.truncf %66 : vector<16x32xf32> to vector<16x32xbf16>
    %c0_52 = arith.constant 0 : index
    %c0_53 = arith.constant 0 : index
    %68 = vector.load %arg4[%c0_52, %c0_53] : memref<32x96xbf16, #tpu.memory_space<vmem>>, vector<32x96xbf16>
    %cst = arith.constant dense<0.000000e+00> : vector<16x96xf32>
    %69 = tpu.matmul %67, %68, %cst {dimension_numbers = #tpu.dot_dimension_numbers<[1], [0], [0], [1], [0, 0, 1, 1], [], []>} : vector<16x32xbf16>, vector<32x96xbf16>, vector<16x96xf32> -> vector<16x96xf32>
    %70 = vector.extract_strided_slice %69 {offsets = [0, 0], sizes = [16, 32], strides = [1, 1]} : vector<16x96xf32> to vector<16x32xf32>
    %c0_54 = arith.constant 0 : index
    %c0_55 = arith.constant 0 : index
    %c0_56 = arith.constant 0 : index
    %71 = vector.load %arg8[%c0_54, %c0_55, %c0_56] : memref<9x16x32xf32, #tpu.memory_space<vmem>>, vector<1x16x32xf32>
    %72 = vector.shape_cast %71 : vector<1x16x32xf32> to vector<16x32xf32>
    %73 = arith.addf %70, %72 : vector<16x32xf32>
    %74 = vector.extract_strided_slice %69 {offsets = [0, 32], sizes = [16, 32], strides = [1, 1]} : vector<16x96xf32> to vector<16x32xf32>
    %c1_57 = arith.constant 1 : index
    %c0_58 = arith.constant 0 : index
    %c0_59 = arith.constant 0 : index
    %75 = vector.load %arg8[%c1_57, %c0_58, %c0_59] : memref<9x16x32xf32, #tpu.memory_space<vmem>>, vector<1x16x32xf32>
    %76 = vector.shape_cast %75 : vector<1x16x32xf32> to vector<16x32xf32>
    %77 = arith.addf %74, %76 : vector<16x32xf32>
    %78 = vector.extract_strided_slice %69 {offsets = [0, 64], sizes = [16, 32], strides = [1, 1]} : vector<16x96xf32> to vector<16x32xf32>
    %c2_60 = arith.constant 2 : index
    %c0_61 = arith.constant 0 : index
    %c0_62 = arith.constant 0 : index
    %79 = vector.load %arg8[%c2_60, %c0_61, %c0_62] : memref<9x16x32xf32, #tpu.memory_space<vmem>>, vector<1x16x32xf32>
    %80 = vector.shape_cast %79 : vector<1x16x32xf32> to vector<16x32xf32>
    %81 = arith.addf %78, %80 : vector<16x32xf32>
    %cst_63 = arith.constant dense<0.000000e+00> : vector<16x16xf32>
    %82 = tpu.matmul %73, %77, %cst_63 {dimension_numbers = #tpu.dot_dimension_numbers<[1], [1], [0], [0], [0, 0, 1, 0], [], []>} : vector<16x32xf32>, vector<16x32xf32>, vector<16x16xf32> -> vector<16x16xf32>
    %c0_64 = arith.constant 0 : index
    %c0_65 = arith.constant 0 : index
    %83 = vector.load %arg12[%c0_64, %c0_65] : memref<16x16xf32, #tpu.memory_space<vmem>>, vector<16x16xf32>
    %84 = arith.addf %82, %83 : vector<16x16xf32>
    %c0_66 = arith.constant 0 : index
    %c0_67 = arith.constant 0 : index
    %85 = vector.load %arg1[%c0_66, %c0_67] : memref<1x16xf32, #tpu.memory_space<vmem>>, vector<1x16xf32>
    %cst_68 = arith.constant 1.000000e+00 : f32
    %86 = vector.broadcast %cst_68 : f32 to vector<1x16xf32>
    %87 = arith.subf %85, %86 : vector<1x16xf32>
    %cst_69 = arith.constant 1.000000e+09 : f32
    %88 = vector.broadcast %cst_69 : f32 to vector<1x16xf32>
    %89 = arith.mulf %87, %88 : vector<1x16xf32>
    %90 = vector.broadcast %89 : vector<1x16xf32> to vector<16x16xf32>
    %91 = arith.addf %84, %90 : vector<16x16xf32>
    %cst_70 = arith.constant dense<0xFF800000> : vector<16xf32>
    %92 = vector.multi_reduction <maximumf>, %91, %cst_70 [1] : vector<16x16xf32> to vector<16xf32>
    %93 = vector.shape_cast %92 : vector<16xf32> to vector<16x1xf32>
    %94 = vector.broadcast %93 : vector<16x1xf32> to vector<16x16xf32>
    %95 = arith.subf %91, %94 : vector<16x16xf32>
    %96 = math.exp %95 : vector<16x16xf32>
    %cst_71 = arith.constant dense<0.000000e+00> : vector<16xf32>
    %97 = vector.multi_reduction <add>, %96, %cst_71 [1] : vector<16x16xf32> to vector<16xf32>
    %98 = vector.shape_cast %97 : vector<16xf32> to vector<16x1xf32>
    %99 = tpu.reciprocal %98 {approx = true} : vector<16x1xf32> -> vector<16x1xf32>
    %100 = vector.broadcast %99 : vector<16x1xf32> to vector<16x16xf32>
    %101 = arith.mulf %96, %100 : vector<16x16xf32>
    %cst_72 = arith.constant dense<0.000000e+00> : vector<16x32xf32>
    %102 = tpu.matmul %101, %81, %cst_72 {dimension_numbers = #tpu.dot_dimension_numbers<[1], [0], [0], [1], [0, 0, 1, 1], [], []>} : vector<16x16xf32>, vector<16x32xf32>, vector<16x32xf32> -> vector<16x32xf32>
    %103 = arith.truncf %102 : vector<16x32xf32> to vector<16x32xbf16>
    %c0_73 = arith.constant 0 : index
    %c0_74 = arith.constant 0 : index
    %104 = vector.load %arg5[%c0_73, %c0_74] : memref<32x32xbf16, #tpu.memory_space<vmem>>, vector<32x32xbf16>
    %cst_75 = arith.constant dense<0.000000e+00> : vector<16x32xf32>
    %105 = tpu.matmul %103, %104, %cst_75 {dimension_numbers = #tpu.dot_dimension_numbers<[1], [0], [0], [1], [0, 0, 1, 1], [], []>} : vector<16x32xbf16>, vector<32x32xbf16>, vector<16x32xf32> -> vector<16x32xf32>
    %c3_76 = arith.constant 3 : index
    %c0_77 = arith.constant 0 : index
    %c0_78 = arith.constant 0 : index
    %106 = vector.load %arg8[%c3_76, %c0_77, %c0_78] : memref<9x16x32xf32, #tpu.memory_space<vmem>>, vector<1x16x32xf32>
    %107 = vector.shape_cast %106 : vector<1x16x32xf32> to vector<16x32xf32>
    %108 = arith.addf %105, %107 : vector<16x32xf32>
    %109 = arith.addf %66, %108 : vector<16x32xf32>
    %c4_79 = arith.constant 4 : index
    %c0_80 = arith.constant 0 : index
    %c0_81 = arith.constant 0 : index
    %110 = vector.load %arg8[%c4_79, %c0_80, %c0_81] : memref<9x16x32xf32, #tpu.memory_space<vmem>>, vector<1x16x32xf32>
    %111 = vector.shape_cast %110 : vector<1x16x32xf32> to vector<16x32xf32>
    %c5_82 = arith.constant 5 : index
    %c0_83 = arith.constant 0 : index
    %c0_84 = arith.constant 0 : index
    %112 = vector.load %arg8[%c5_82, %c0_83, %c0_84] : memref<9x16x32xf32, #tpu.memory_space<vmem>>, vector<1x16x32xf32>
    %113 = vector.shape_cast %112 : vector<1x16x32xf32> to vector<16x32xf32>
    %cst_85 = arith.constant dense<0.000000e+00> : vector<16xf32>
    %114 = vector.multi_reduction <add>, %109, %cst_85 [1] : vector<16x32xf32> to vector<16xf32>
    %115 = vector.shape_cast %114 : vector<16xf32> to vector<16x1xf32>
    %cst_86 = arith.constant 3.200000e+01 : f32
    %116 = vector.broadcast %cst_86 : f32 to vector<16x1xf32>
    %117 = arith.divf %115, %116 : vector<16x1xf32>
    %118 = vector.broadcast %117 : vector<16x1xf32> to vector<16x32xf32>
    %119 = arith.subf %109, %118 : vector<16x32xf32>
    %120 = vector.broadcast %117 : vector<16x1xf32> to vector<16x32xf32>
    %121 = arith.subf %109, %120 : vector<16x32xf32>
    %122 = arith.mulf %119, %121 : vector<16x32xf32>
    %cst_87 = arith.constant dense<0.000000e+00> : vector<16xf32>
    %123 = vector.multi_reduction <add>, %122, %cst_87 [1] : vector<16x32xf32> to vector<16xf32>
    %124 = vector.shape_cast %123 : vector<16xf32> to vector<16x1xf32>
    %cst_88 = arith.constant 3.200000e+01 : f32
    %125 = vector.broadcast %cst_88 : f32 to vector<16x1xf32>
    %126 = arith.divf %124, %125 : vector<16x1xf32>
    %127 = vector.broadcast %117 : vector<16x1xf32> to vector<16x32xf32>
    %128 = arith.subf %109, %127 : vector<16x32xf32>
    %cst_89 = arith.constant 9.99999996E-13 : f32
    %129 = vector.broadcast %cst_89 : f32 to vector<16x1xf32>
    %130 = arith.addf %126, %129 : vector<16x1xf32>
    %131 = math.rsqrt %130 : vector<16x1xf32>
    %132 = vector.broadcast %131 : vector<16x1xf32> to vector<16x32xf32>
    %133 = arith.mulf %128, %132 : vector<16x32xf32>
    %134 = arith.mulf %133, %111 : vector<16x32xf32>
    %135 = arith.addf %134, %113 : vector<16x32xf32>
    %136 = arith.truncf %135 : vector<16x32xf32> to vector<16x32xbf16>
    %c0_90 = arith.constant 0 : index
    %c0_91 = arith.constant 0 : index
    %137 = vector.load %arg6[%c0_90, %c0_91] : memref<32x64xbf16, #tpu.memory_space<vmem>>, vector<32x64xbf16>
    %cst_92 = arith.constant dense<0.000000e+00> : vector<16x64xf32>
    %138 = tpu.matmul %136, %137, %cst_92 {dimension_numbers = #tpu.dot_dimension_numbers<[1], [0], [0], [1], [0, 0, 1, 1], [], []>} : vector<16x32xbf16>, vector<32x64xbf16>, vector<16x64xf32> -> vector<16x64xf32>
    %c0_93 = arith.constant 0 : index
    %c0_94 = arith.constant 0 : index
    %139 = vector.load %arg9[%c0_93, %c0_94] : memref<16x64xf32, #tpu.memory_space<vmem>>, vector<16x64xf32>
    %140 = arith.addf %138, %139 : vector<16x64xf32>
    %cst_95 = arith.constant 5.000000e-01 : f32
    %141 = vector.broadcast %cst_95 : f32 to vector<16x64xf32>
    %142 = arith.mulf %141, %140 : vector<16x64xf32>
    %cst_96 = arith.constant 4.471500e-02 : f32
    %143 = vector.broadcast %cst_96 : f32 to vector<16x64xf32>
    %144 = arith.mulf %143, %140 : vector<16x64xf32>
    %145 = arith.mulf %144, %140 : vector<16x64xf32>
    %146 = arith.mulf %145, %140 : vector<16x64xf32>
    %147 = arith.addf %140, %146 : vector<16x64xf32>
    %cst_97 = arith.constant 0.797884583 : f32
    %148 = vector.broadcast %cst_97 : f32 to vector<16x64xf32>
    %149 = arith.mulf %148, %147 : vector<16x64xf32>
    %150 = math.tanh %149 : vector<16x64xf32>
    %cst_98 = arith.constant 1.000000e+00 : f32
    %151 = vector.broadcast %cst_98 : f32 to vector<16x64xf32>
    %152 = arith.addf %151, %150 : vector<16x64xf32>
    %153 = arith.mulf %142, %152 : vector<16x64xf32>
    %154 = arith.truncf %153 : vector<16x64xf32> to vector<16x64xbf16>
    %c0_99 = arith.constant 0 : index
    %c0_100 = arith.constant 0 : index
    %155 = vector.load %arg7[%c0_99, %c0_100] : memref<64x32xbf16, #tpu.memory_space<vmem>>, vector<64x32xbf16>
    %cst_101 = arith.constant dense<0.000000e+00> : vector<16x32xf32>
    %156 = tpu.matmul %154, %155, %cst_101 {dimension_numbers = #tpu.dot_dimension_numbers<[1], [0], [0], [1], [0, 0, 1, 1], [], []>} : vector<16x64xbf16>, vector<64x32xbf16>, vector<16x32xf32> -> vector<16x32xf32>
    %c6_102 = arith.constant 6 : index
    %c0_103 = arith.constant 0 : index
    %c0_104 = arith.constant 0 : index
    %157 = vector.load %arg8[%c6_102, %c0_103, %c0_104] : memref<9x16x32xf32, #tpu.memory_space<vmem>>, vector<1x16x32xf32>
    %158 = vector.shape_cast %157 : vector<1x16x32xf32> to vector<16x32xf32>
    %159 = arith.addf %156, %158 : vector<16x32xf32>
    %160 = arith.addf %135, %159 : vector<16x32xf32>
    %c7_105 = arith.constant 7 : index
    %c0_106 = arith.constant 0 : index
    %c0_107 = arith.constant 0 : index
    %161 = vector.load %arg8[%c7_105, %c0_106, %c0_107] : memref<9x16x32xf32, #tpu.memory_space<vmem>>, vector<1x16x32xf32>
    %162 = vector.shape_cast %161 : vector<1x16x32xf32> to vector<16x32xf32>
    %c8_108 = arith.constant 8 : index
    %c0_109 = arith.constant 0 : index
    %c0_110 = arith.constant 0 : index
    %163 = vector.load %arg8[%c8_108, %c0_109, %c0_110] : memref<9x16x32xf32, #tpu.memory_space<vmem>>, vector<1x16x32xf32>
    %164 = vector.shape_cast %163 : vector<1x16x32xf32> to vector<16x32xf32>
    %cst_111 = arith.constant dense<0.000000e+00> : vector<16xf32>
    %165 = vector.multi_reduction <add>, %160, %cst_111 [1] : vector<16x32xf32> to vector<16xf32>
    %166 = vector.shape_cast %165 : vector<16xf32> to vector<16x1xf32>
    %cst_112 = arith.constant 3.200000e+01 : f32
    %167 = vector.broadcast %cst_112 : f32 to vector<16x1xf32>
    %168 = arith.divf %166, %167 : vector<16x1xf32>
    %169 = vector.broadcast %168 : vector<16x1xf32> to vector<16x32xf32>
    %170 = arith.subf %160, %169 : vector<16x32xf32>
    %171 = vector.broadcast %168 : vector<16x1xf32> to vector<16x32xf32>
    %172 = arith.subf %160, %171 : vector<16x32xf32>
    %173 = arith.mulf %170, %172 : vector<16x32xf32>
    %cst_113 = arith.constant dense<0.000000e+00> : vector<16xf32>
    %174 = vector.multi_reduction <add>, %173, %cst_113 [1] : vector<16x32xf32> to vector<16xf32>
    %175 = vector.shape_cast %174 : vector<16xf32> to vector<16x1xf32>
    %cst_114 = arith.constant 3.200000e+01 : f32
    %176 = vector.broadcast %cst_114 : f32 to vector<16x1xf32>
    %177 = arith.divf %175, %176 : vector<16x1xf32>
    %178 = vector.broadcast %168 : vector<16x1xf32> to vector<16x32xf32>
    %179 = arith.subf %160, %178 : vector<16x32xf32>
    %cst_115 = arith.constant 9.99999996E-13 : f32
    %180 = vector.broadcast %cst_115 : f32 to vector<16x1xf32>
    %181 = arith.addf %177, %180 : vector<16x1xf32>
    %182 = math.rsqrt %181 : vector<16x1xf32>
    %183 = vector.broadcast %182 : vector<16x1xf32> to vector<16x32xf32>
    %184 = arith.mulf %179, %183 : vector<16x32xf32>
    %185 = arith.mulf %184, %162 : vector<16x32xf32>
    %186 = arith.addf %185, %164 : vector<16x32xf32>
    %187 = arith.truncf %186 : vector<16x32xf32> to vector<16x32xbf16>
    %c0_116 = arith.constant 0 : index
    %c0_117 = arith.constant 0 : index
    %188 = vector.load %arg10[%c0_116, %c0_117] : memref<32x128xbf16, #tpu.memory_space<vmem>>, vector<32x128xbf16>
    %cst_118 = arith.constant dense<0.000000e+00> : vector<16x128xf32>
    %189 = tpu.matmul %187, %188, %cst_118 {dimension_numbers = #tpu.dot_dimension_numbers<[1], [0], [0], [1], [0, 0, 1, 1], [], []>} : vector<16x32xbf16>, vector<32x128xbf16>, vector<16x128xf32> -> vector<16x128xf32>
    %c0_119 = arith.constant 0 : index
    %c0_120 = arith.constant 0 : index
    %190 = vector.load %arg11[%c0_119, %c0_120] : memref<16x128xf32, #tpu.memory_space<vmem>>, vector<16x128xf32>
    %191 = arith.addf %189, %190 : vector<16x128xf32>
    %c0_121 = arith.constant 0 : index
    %c0_122 = arith.constant 0 : index
    %192 = vector.load %arg13[%c0_121, %c0_122] : memref<16x128xf32, #tpu.memory_space<vmem>>, vector<16x128xf32>
    tpu.vector_store %arg13[%c0_121, %c0_122], %191 {strides = array<i32>} : memref<16x128xf32, #tpu.memory_space<vmem>>, vector<16x128xf32>,
    return
  }
}

</mosaic_0001>

<llo_original>
// kernel: multi_task_forward.1
$region0: #{multi_task_forward.1}
  #allocation0 [shape = 'u32[]', space=smem, size = 0x4, offset = 0x4, fixed_abs, tag = 'smem constant byte address 0x4 - core index']
  #allocation1 [shape = 'u32[144,128]{1,0:T(1,128)}', space=vmem, size = 0x12000, scoped, tag = 'internal scratch']
  #allocation2 [shape = 'f32[16,32]{1,0:T(8,128)}', space=vmem, size = 0x2000, scoped, tag = 'scratch operand']
  %s0 = inlined_call_operand.vmem [shape: s32[16], index: 0, kind: input, shape index: {}]
  %s1 = inlined_call_operand.vmem [shape: f32[1,16], index: 1, kind: input, shape index: {}]
  %s2 = inlined_call_operand.vmem [shape: f32[100,32], index: 2, kind: input, shape index: {}]
  %s3 = inlined_call_operand.vmem [shape: f32[16,32], index: 3, kind: input, shape index: {}]
  %s4 = inlined_call_operand.vmem [shape: bf16[32,96], index: 4, kind: input, shape index: {}]
  %s5 = inlined_call_operand.vmem [shape: bf16[32,32], index: 5, kind: input, shape index: {}]
  %s6 = inlined_call_operand.hbm [shape: bf16[32,64], index: 6, kind: input, shape index: {}]
  %s7 = inlined_call_operand.vmem [shape: bf16[64,32], index: 7, kind: input, shape index: {}]
  %s8 = inlined_call_operand.vmem [shape: f32[9,16,32], index: 8, kind: input, shape index: {}]
  %s9 = inlined_call_operand.hbm [shape: f32[16,64], index: 9, kind: input, shape index: {}]
  %s10 = inlined_call_operand.hbm [shape: bf16[32,128], index: 10, kind: input, shape index: {}]
  %s11 = inlined_call_operand.hbm [shape: f32[16,128], index: 11, kind: input, shape index: {}]
  %s12 = inlined_call_operand.hbm [shape: f32[16,16], index: 12, kind: input, shape index: {}]
  %s13 = inlined_call_operand.vmem [shape: f32[16,128], index: 13, kind: output, shape index: {}]
  %s14 = sld [smem:[#allocation0]]
  $region86: #{multi_task_forward.1} parent=0
    _
  %s16 = ssub.s32 1, %s14
  %s17 = scalar_select 0, %s16, %s14
  $region1: #{multi_task_forward.1} parent=0
    #allocation3 [shape = 'u8[512]{0}', space=smem, size = 0x200, scoped, tag = 'input window, operand 0, single buffered']
    #allocation4 [shape = 's32[1]{0}', space=sflag, size = 0x4, scoped, tag = 'scoped memory for multi_task_forward.1']
    #allocation5 [shape = 's32[1]{0}', space=sflag, size = 0x4, scoped, tag = 'scoped memory for multi_task_forward.1']
    #allocation6 [shape = 'u8[8192]{0}', space=vmem, size = 0x2000, scoped, tag = 'input window, operand 6, single buffered']
    #allocation7 [shape = 'u8[8192]{0}', space=vmem, size = 0x2000, scoped, tag = 'input window, operand 9, single buffered']
    #allocation8 [shape = 's32[1]{0}', space=sflag, size = 0x4, scoped, tag = 'scoped memory for multi_task_forward.1']
    #allocation9 [shape = 'u8[8192]{0}', space=vmem, size = 0x2000, scoped, tag = 'input window, operand 10, single buffered']
    #allocation10 [shape = 'u8[8192]{0}', space=vmem, size = 0x2000, scoped, tag = 'input window, operand 11, single buffered']
    #allocation11 [shape = 's32[1]{0}', space=sflag, size = 0x4, scoped, tag = 'scoped memory for multi_task_forward.1']
    #allocation12 [shape = 'u8[8192]{0}', space=vmem, size = 0x2000, scoped, tag = 'input window, operand 12, single buffered']
    %18 = vsyncpa [#allocation5], 0
    %19 = vsyncpa [#allocation4], 0
    %20 = vsyncpa [#allocation8], 0
    %21 = vsyncpa [#allocation11], 0
    // Predicated region
    $region2: #{multi_task_forward.1} parent=1 // pred_check
      _
    $region3: #{multi_task_forward.1} parent=1 // pred_check_branch
      %23 = sbr.rel (0) target = $region5
    $region4: #{multi_task_forward.1} parent=1 // pred_region
      %s25 = ssub.s32 16, 16
      %26 = vsyncadd [#allocation5], %s25
      %s28 = sshll.u32 %s0, 4
      %s29 = int_to_ptr.vmem [resolvable:$true] %s28
      %31 = dma.vmem_to_smem %s29, 16, [#allocation3], [#allocation5]
    $region5: #{multi_task_forward.1} parent=1 // pred_fallthru
      _
    // Predicated region
    $region6: #{multi_task_forward.1} parent=1 // pred_check
      _
    $region7: #{multi_task_forward.1} parent=1 // pred_check_branch
      %33 = sbr.rel (0) target = $region9
    $region8: #{multi_task_forward.1} parent=1 // pred_region
      _
    $region9: #{multi_task_forward.1} parent=1 // pred_fallthru
      _
    // Predicated region
    $region10: #{multi_task_forward.1} parent=1 // pred_check
      _
    $region11: #{multi_task_forward.1} parent=1 // pred_check_branch
      %35 = sbr.rel (0) target = $region13
    $region12: #{multi_task_forward.1} parent=1 // pred_region
      _
    $region13: #{multi_task_forward.1} parent=1 // pred_fallthru
      _
    // Predicated region
    $region14: #{multi_task_forward.1} parent=1 // pred_check
      _
    $region15: #{multi_task_forward.1} parent=1 // pred_check_branch
      %37 = sbr.rel (0) target = $region17
    $region16: #{multi_task_forward.1} parent=1 // pred_region
      _
    $region17: #{multi_task_forward.1} parent=1 // pred_fallthru
      _
    // Predicated region
    $region18: #{multi_task_forward.1} parent=1 // pred_check
      _
    $region19: #{multi_task_forward.1} parent=1 // pred_check_branch
      %39 = sbr.rel (0) target = $region21
    $region20: #{multi_task_forward.1} parent=1 // pred_region
      _
    $region21: #{multi_task_forward.1} parent=1 // pred_fallthru
      _
    // Predicated region
    $region22: #{multi_task_forward.1} parent=1 // pred_check
      _
    $region23: #{multi_task_forward.1} parent=1 // pred_check_branch
      %41 = sbr.rel (0) target = $region25
    $region24: #{multi_task_forward.1} parent=1 // pred_region
      _
    $region25: #{multi_task_forward.1} parent=1 // pred_fallthru
      _
    // Predicated region
    $region26: #{multi_task_forward.1} parent=1 // pred_check
      _
    $region27: #{multi_task_forward.1} parent=1 // pred_check_branch
      %43 = sbr.rel (0) target = $region29
    $region28: #{multi_task_forward.1} parent=1 // pred_region
      %s45 = ssub.s32 256, 256
      %46 = vsyncadd [#allocation4], %s45
      %s47 = sshll.u32 [#allocation6], 4
      %s48 = int_to_ptr.vmem [resolvable:$true] %s47
      %53 = dma.hbm_to_vmem [thread:$0]  %s6, 256, %s48, [#allocation4], 64, 64, 4
    $region29: #{multi_task_forward.1} parent=1 // pred_fallthru
      _
    // Predicated region
    $region30: #{multi_task_forward.1} parent=1 // pred_check
      _
    $region31: #{multi_task_forward.1} parent=1 // pred_check_branch
      %55 = sbr.rel (0) target = $region33
    $region32: #{multi_task_forward.1} parent=1 // pred_region
      _
    $region33: #{multi_task_forward.1} parent=1 // pred_fallthru
      _
    // Predicated region
    $region34: #{multi_task_forward.1} parent=1 // pred_check
      _
    $region35: #{multi_task_forward.1} parent=1 // pred_check_branch
      %57 = sbr.rel (0) target = $region37
    $region36: #{multi_task_forward.1} parent=1 // pred_region
      _
    $region37: #{multi_task_forward.1} parent=1 // pred_fallthru
      _
    // Predicated region
    $region38: #{multi_task_forward.1} parent=1 // pred_check
      _
    $region39: #{multi_task_forward.1} parent=1 // pred_check_branch
      %59 = sbr.rel (0) target = $region41
    $region40: #{multi_task_forward.1} parent=1 // pred_region
      %s61 = ssub.s32 256, 256
      %62 = vsyncadd [#allocation8], %s61
      %s63 = sshll.u32 [#allocation7], 4
      %s64 = int_to_ptr.vmem [resolvable:$true] %s63
      %69 = dma.hbm_to_vmem [thread:$0]  %s9, 256, %s64, [#allocation8], 128, 128, 8
    $region41: #{multi_task_forward.1} parent=1 // pred_fallthru
      _
    // Predicated region
    $region42: #{multi_task_forward.1} parent=1 // pred_check
      _
    $region43: #{multi_task_forward.1} parent=1 // pred_check_branch
      %71 = sbr.rel (0) target = $region45
    $region44: #{multi_task_forward.1} parent=1 // pred_region
      %s73 = ssub.s32 256, 256
      %74 = vsyncadd [#allocation8], %s73
      %s75 = sshll.u32 [#allocation9], 4
      %s76 = int_to_ptr.vmem [resolvable:$true] %s75
      %81 = dma.hbm_to_vmem [thread:$0]  %s10, 256, %s76, [#allocation8], 64, 64, 4
    $region45: #{multi_task_forward.1} parent=1 // pred_fallthru
      _
    // Predicated region
    $region46: #{multi_task_forward.1} parent=1 // pred_check
      _
    $region47: #{multi_task_forward.1} parent=1 // pred_check_branch
      %83 = sbr.rel (0) target = $region49
    $region48: #{multi_task_forward.1} parent=1 // pred_region
      %s85 = ssub.s32 256, 256
      %86 = vsyncadd [#allocation11], %s85
      %s87 = sshll.u32 [#allocation10], 4
      %s88 = int_to_ptr.vmem [resolvable:$true] %s87
      %93 = dma.hbm_to_vmem [thread:$0]  %s11, 256, %s88, [#allocation11], 128, 128, 8
    $region49: #{multi_task_forward.1} parent=1 // pred_fallthru
      _
    // Predicated region
    $region50: #{multi_task_forward.1} parent=1 // pred_check
      _
    $region51: #{multi_task_forward.1} parent=1 // pred_check_branch
      %95 = sbr.rel (0) target = $region53
    $region52: #{multi_task_forward.1} parent=1 // pred_region
      %s97 = ssub.s32 256, 256
      %98 = vsyncadd [#allocation11], %s97
      %s99 = sshll.u32 [#allocation12], 4
      %s100 = int_to_ptr.vmem [resolvable:$true] %s99
      %105 = dma.hbm_to_vmem [thread:$0]  %s12, 256, %s100, [#allocation11], 128, 128, 8
    $region53: #{multi_task_forward.1} parent=1 // pred_fallthru
      _
    // Predicated region
    $region54: #{multi_task_forward.1} parent=1 // pred_check
      _
    $region55: #{multi_task_forward.1} parent=1 // pred_check_branch
      %107 = sbr.rel (0) target = $region57
    $region56: #{multi_task_forward.1} parent=1 // pred_region
      %108 = dma.done [#allocation5], 16
    $region57: #{multi_task_forward.1} parent=1 // pred_fallthru
      _
    // Predicated region
    $region58: #{multi_task_forward.1} parent=1 // pred_check
      _
    $region59: #{multi_task_forward.1} parent=1 // pred_check_branch
      %110 = sbr.rel (0) target = $region61
    $region60: #{multi_task_forward.1} parent=1 // pred_region
      %111 = dma.done [#allocation4], 256
    $region61: #{multi_task_forward.1} parent=1 // pred_fallthru
      _
    // Predicated region
    $region62: #{multi_task_forward.1} parent=1 // pred_check
      _
    $region63: #{multi_task_forward.1} parent=1 // pred_check_branch
      %113 = sbr.rel (0) target = $region65
    $region64: #{multi_task_forward.1} parent=1 // pred_region
      %114 = dma.done [#allocation8], 256
    $region65: #{multi_task_forward.1} parent=1 // pred_fallthru
      _
    // Predicated region
    $region66: #{multi_task_forward.1} parent=1 // pred_check
      _
    $region67: #{multi_task_forward.1} parent=1 // pred_check_branch
      %116 = sbr.rel (0) target = $region69
    $region68: #{multi_task_forward.1} parent=1 // pred_region
      %117 = dma.done [#allocation8], 256
    $region69: #{multi_task_forward.1} parent=1 // pred_fallthru
      _
    // Predicated region
    $region70: #{multi_task_forward.1} parent=1 // pred_check
      _
    $region71: #{multi_task_forward.1} parent=1 // pred_check_branch
      %119 = sbr.rel (0) target = $region73
    $region72: #{multi_task_forward.1} parent=1 // pred_region
      %120 = dma.done [#allocation11], 256
    $region73: #{multi_task_forward.1} parent=1 // pred_fallthru
      _
    // Predicated region
    $region74: #{multi_task_forward.1} parent=1 // pred_check
      _
    $region75: #{multi_task_forward.1} parent=1 // pred_check_branch
      %122 = sbr.rel (0) target = $region77
    $region76: #{multi_task_forward.1} parent=1 // pred_region
      %123 = dma.done [#allocation11], 256
    $region77: #{multi_task_forward.1} parent=1 // pred_fallthru
      _
    %124 = sfence
    %s126 = sld [smem:[#allocation3]]
    %s127 = scalar_lea.vmem %s2, %s126
    %v128 = vld [vmem:[%s127] sm:$0x1]
    %vm129 = vcmask 253952
    %130 = vst.msk [vmem:[#allocation2] sm:$0x1] %vm129, %v128
    %s131 = sld [smem:[#allocation3 + $0x1]]
    %s132 = scalar_lea.vmem %s2, %s131
    %v133 = vld [vmem:[%s132] sm:$0x1]
    %134 = vst.msk [vmem:[#allocation2 + $0x1] sm:$0x1] %vm129, %v133
    %s135 = sld [smem:[#allocation3 + $0x2]]
    %s136 = scalar_lea.vmem %s2, %s135
    %v137 = vld [vmem:[%s136] sm:$0x1]
    %138 = vst.msk [vmem:[#allocation2 + $0x2] sm:$0x1] %vm129, %v137
    %s139 = sld [smem:[#allocation3 + $0x3]]
    %s140 = scalar_lea.vmem %s2, %s139
    %v141 = vld [vmem:[%s140] sm:$0x1]
    %142 = vst.msk [vmem:[#allocation2 + $0x3] sm:$0x1] %vm129, %v141
    %s143 = sld [smem:[#allocation3 + $0x4]]
    %s144 = scalar_lea.vmem %s2, %s143
    %v145 = vld [vmem:[%s144] sm:$0x1]
    %146 = vst.msk [vmem:[#allocation2 + $0x4] sm:$0x1] %vm129, %v145
    %s147 = sld [smem:[#allocation3 + $0x5]]
    %s148 = scalar_lea.vmem %s2, %s147
    %v149 = vld [vmem:[%s148] sm:$0x1]
    %150 = vst.msk [vmem:[#allocation2 + $0x5] sm:$0x1] %vm129, %v149
    %s151 = sld [smem:[#allocation3 + $0x6]]
    %s152 = scalar_lea.vmem %s2, %s151
    %v153 = vld [vmem:[%s152] sm:$0x1]
    %154 = vst.msk [vmem:[#allocation2 + $0x6] sm:$0x1] %vm129, %v153
    %s155 = sld [smem:[#allocation3 + $0x7]]
    %s156 = scalar_lea.vmem %s2, %s155
    %v157 = vld [vmem:[%s156] sm:$0x1]
    %158 = vst.msk [vmem:[#allocation2 + $0x7] sm:$0x1] %vm129, %v157
    %s159 = sld [smem:[#allocation3 + $0x8]]
    %s160 = scalar_lea.vmem %s2, %s159
    %v161 = vld [vmem:[%s160] sm:$0x1]
    %162 = vst.msk [vmem:[#allocation2 + $0x8] sm:$0x1] %vm129, %v161
    %s163 = sld [smem:[#allocation3 + $0x9]]
    %s164 = scalar_lea.vmem %s2, %s163
    %v165 = vld [vmem:[%s164] sm:$0x1]
    %166 = vst.msk [vmem:[#allocation2 + $0x9] sm:$0x1] %vm129, %v165
    %s167 = sld [smem:[#allocation3 + $0xa]]
    %s168 = scalar_lea.vmem %s2, %s167
    %v169 = vld [vmem:[%s168] sm:$0x1]
    %170 = vst.msk [vmem:[#allocation2 + $0xa] sm:$0x1] %vm129, %v169
    %s171 = sld [smem:[#allocation3 + $0xb]]
    %s172 = scalar_lea.vmem %s2, %s171
    %v173 = vld [vmem:[%s172] sm:$0x1]
    %174 = vst.msk [vmem:[#allocation2 + $0xb] sm:$0x1] %vm129, %v173
    %s175 = sld [smem:[#allocation3 + $0xc]]
    %s176 = scalar_lea.vmem %s2, %s175
    %v177 = vld [vmem:[%s176] sm:$0x1]
    %178 = vst.msk [vmem:[#allocation2 + $0xc] sm:$0x1] %vm129, %v177
    %s179 = sld [smem:[#allocation3 + $0xd]]
    %s180 = scalar_lea.vmem %s2, %s179
    %v181 = vld [vmem:[%s180] sm:$0x1]
    %182 = vst.msk [vmem:[#allocation2 + $0xd] sm:$0x1] %vm129, %v181
    %s183 = sld [smem:[#allocation3 + $0xe]]
    %s184 = scalar_lea.vmem %s2, %s183
    %v185 = vld [vmem:[%s184] sm:$0x1]
    %186 = vst.msk [vmem:[#allocation2 + $0xe] sm:$0x1] %vm129, %v185
    %s187 = sld [smem:[#allocation3 + $0xf]]
    %s188 = scalar_lea.vmem %s2, %s187
    %v189 = vld [vmem:[%s188] sm:$0x1]
    %190 = vst.msk [vmem:[#allocation2 + $0xf] sm:$0x1] %vm129, %v189
    %v191 = vld [vmem:[#allocation2] sm:$0xff]
    %v192 = vld [vmem:[#allocation2 + $0x8] sm:$0xff]
    %v193 = vld [vmem:[%s3] sm:$0xff]
    %v194 = vld [vmem:[%s3 + $0x8] sm:$0xff]
    %v195 = vadd.f32 %v191, %v193
    %v196 = vadd.f32 %v192, %v194
    %v197 = vpack.c.bf16 %v196, %v195
    %v198 = vld [vmem:[%s4] sm:$0xf]
    %v199 = vld [vmem:[%s4 + $0x4] sm:$0xf]
    %v200 = vld [vmem:[%s4 + $0x8] sm:$0xf]
    %v201 = vld [vmem:[%s4 + $0xc] sm:$0xf]
    %v206 = vunpack.c.l.b16 %v198
    %v207 = vunpack.c.l.b16 %v199
    %v208 = vunpack.c.l.b16 %v200
    %v209 = vunpack.c.l.b16 %v201
    %v210 = vpack.c.b16 %v207, %v206
    %v211 = vpack.c.b16 %v209, %v208
    %vm214 = vcmask 261120
    %v216 = vsel %vm214, %v197, 0
    %218 = vmatprep.subr.bf16.mxu0 0
    %219 = vmatpush1.bf16.msra.mxu0 0
    %220 = vmatprep.subr.bf16.mxu0 0
    %221 = vmatpush1.bf16.msra.mxu0 0
    %222 = vmatprep.subr.bf16.mxu0 0
    %223 = vmatpush1.bf16.msra.mxu0 0
    %224 = vmatprep.subr.bf16.mxu0 0
    %225 = vmatpush1.bf16.msra.mxu0 0
    %226 = vmatprep.subr.bf16.mxu0 0
    %227 = vmatpush1.bf16.msra.mxu0 0
    %228 = vmatprep.subr.bf16.mxu0 0
    %229 = vmatpush1.bf16.msra.mxu0 0
    %230 = vmatprep.subr.bf16.mxu0 0
    %231 = vmatpush1.bf16.msra.mxu0 %v211
    %232 = vmatprep.subr.bf16.mxu0 0
    %233 = vmatpush1.bf16.msra.mxu0 %v210
    %234 = vmatprep.subr.bf16.mxu0 0
    %235 = vmatpush2.bf16.msra.mxu0 0
    %236 = vmatprep.subr.bf16.mxu0 0
    %237 = vmatpush2.bf16.msra.mxu0 0
    %238 = vmatprep.subr.bf16.mxu0 0
    %239 = vmatpush2.bf16.msra.mxu0 0
    %240 = vmatprep.subr.bf16.mxu0 0
    %241 = vmatpush2.bf16.msra.mxu0 0
    %242 = vmatprep.subr.bf16.mxu0 0
    %243 = vmatpush2.bf16.msra.mxu0 0
    %244 = vmatprep.subr.bf16.mxu0 0
    %245 = vmatpush2.bf16.msra.mxu0 0
    %246 = vmatprep.subr.bf16.mxu0 0
    %247 = vmatpush2.bf16.msra.mxu0 0
    %248 = vmatprep.subr.bf16.mxu0 0
    %249 = vmatpush2.bf16.msra.mxu0 0
    %250 = vmatprep.mubr.bf16.mxu0 0
    %251 = vmatmul.mubr.bf16.gmra.mxu0 %v216
    %v252 = vpop.f32.mrf.mxu0
    %v253 = vadd.f32 0.0, %v252
    %v254 = vpop.f32.mrf.mxu0
    %v255 = vpop.f32.mrf.mxu0
    %v256 = vadd.f32 0.0, %v255
    %v257 = vpop.f32.mrf.mxu0
    %258 = vdwg.mxu0
    %v259 = vld [vmem:[%s8] sm:$0xff]
    %v260 = vld [vmem:[%s8 + $0x8] sm:$0xff]
    %v261 = vadd.f32 %v253, %v259
    %v262 = vadd.f32 %v256, %v260
    %s263 = scalar_lea.vmem %s8, 16
    %v264 = vld [vmem:[%s263] sm:$0xff]
    %v265 = vld [vmem:[%s263 + $0x8] sm:$0xff]
    %268 = vrot.lane.b32.xlu0 %v264, 32
    %v269 = vpop.permute.xlu0 %268
    %270 = vrot.lane.b32.xlu0 %v265, 32
    %v271 = vpop.permute.xlu0 %270
    %v274 = vadd.f32 %v253, %v269
    %v275 = vadd.f32 %v256, %v271
    %s276 = scalar_lea.vmem %s8, 32
    %v277 = vld [vmem:[%s276] sm:$0xff]
    %v278 = vld [vmem:[%s276 + $0x8] sm:$0xff]
    %281 = vrot.lane.b32.xlu0 %v277, 64
    %v282 = vpop.permute.xlu0 %281
    %283 = vrot.lane.b32.xlu0 %v278, 64
    %v284 = vpop.permute.xlu0 %283
    %v287 = vadd.f32 %v253, %v282
    %v288 = vadd.f32 %v256, %v284
    %v289 = vld [vmem:[#allocation12] sm:$0xff]
    %v290 = vld [vmem:[#allocation12 + $0x8] sm:$0xff]
    %293 = vrot.lane.b32.xlu0 %v274, 96
    %v294 = vpop.permute.xlu0 %293
    %295 = vrot.lane.b32.xlu0 %v275, 96
    %v296 = vpop.permute.xlu0 %295
    %v298 = vsel %vm214, %v261, 0
    %v301 = vsel %vm214, %v262, 0
    %v303 = vsel %vm214, %v294, 0
    %v305 = vsel %vm214, %v296, 0
    %307 = vmatprep.subr.mxu0 0.0
    %308 = vmatpush1.xpose.msra.mxu0 0.0
    %309 = vmatprep.subr.mxu0 0.0
    %310 = vmatpush1.xpose.msra.mxu0 0.0
    %311 = vmatprep.subr.mxu0 0.0
    %312 = vmatpush1.xpose.msra.mxu0 0.0
    %313 = vmatprep.subr.mxu0 0.0
    %314 = vmatpush1.xpose.msra.mxu0 0.0
    %315 = vmatprep.subr.mxu0 0.0
    %316 = vmatpush1.xpose.msra.mxu0 0.0
    %317 = vmatprep.subr.mxu0 0.0
    %318 = vmatpush1.xpose.msra.mxu0 0.0
    %319 = vmatprep.subr.mxu0 0.0
    %320 = vmatpush1.xpose.msra.mxu0 0.0
    %321 = vmatprep.subr.mxu0 0.0
    %322 = vmatpush1.xpose.msra.mxu0 0.0
    %323 = vmatprep.subr.mxu0 0.0
    %324 = vmatpush1.xpose.msra.mxu0 0.0
    %325 = vmatprep.subr.mxu0 0.0
    %326 = vmatpush1.xpose.msra.mxu0 0.0
    %327 = vmatprep.subr.mxu0 0.0
    %328 = vmatpush1.xpose.msra.mxu0 0.0
    %329 = vmatprep.subr.mxu0 0.0
    %330 = vmatpush1.xpose.msra.mxu0 0.0
    %331 = vmatprep.subr.mxu0 0.0
    %332 = vmatpush1.xpose.msra.mxu0 0.0
    %333 = vmatprep.subr.mxu0 0.0
    %334 = vmatpush1.xpose.msra.mxu0 0.0
    %335 = vmatprep.subr.mxu0 0.0
    %336 = vmatpush1.xpose.msra.mxu0 %v305
    %337 = vmatprep.subr.mxu0 0.0
    %338 = vmatpush1.xpose.msra.mxu0 %v303
    %339 = vmatprep.subr.mxu0 0.0
    %340 = vmatpush2.xpose.msra.mxu0 0.0
    %341 = vmatprep.subr.mxu0 0.0
    %342 = vmatpush2.xpose.msra.mxu0 0.0
    %343 = vmatprep.subr.mxu0 0.0
    %344 = vmatpush2.xpose.msra.mxu0 0.0
    %345 = vmatprep.subr.mxu0 0.0
    %346 = vmatpush2.xpose.msra.mxu0 0.0
    %347 = vmatprep.subr.mxu0 0.0
    %348 = vmatpush2.xpose.msra.mxu0 0.0
    %349 = vmatprep.subr.mxu0 0.0
    %350 = vmatpush2.xpose.msra.mxu0 0.0
    %351 = vmatprep.subr.mxu0 0.0
    %352 = vmatpush2.xpose.msra.mxu0 0.0
    %353 = vmatprep.subr.mxu0 0.0
    %354 = vmatpush2.xpose.msra.mxu0 0.0
    %355 = vmatprep.subr.mxu0 0.0
    %356 = vmatpush2.xpose.msra.mxu0 0.0
    %357 = vmatprep.subr.mxu0 0.0
    %358 = vmatpush2.xpose.msra.mxu0 0.0
    %359 = vmatprep.subr.mxu0 0.0
    %360 = vmatpush2.xpose.msra.mxu0 0.0
    %361 = vmatprep.subr.mxu0 0.0
    %362 = vmatpush2.xpose.msra.mxu0 0.0
    %363 = vmatprep.subr.mxu0 0.0
    %364 = vmatpush2.xpose.msra.mxu0 0.0
    %365 = vmatprep.subr.mxu0 0.0
    %366 = vmatpush2.xpose.msra.mxu0 0.0
    %367 = vmatprep.subr.mxu0 0.0
    %368 = vmatpush2.xpose.msra.mxu0 0.0
    %369 = vmatprep.subr.mxu0 0.0
    %370 = vmatpush2.xpose.msra.mxu0 0.0
    %371 = vmatprep.mubr.f32.mxu0 0.0
    %372 = vmatmul.mubr.f32.gmra.mxu0 %v298
    %v373 = vpop.f32.mrf.mxu0
    %v374 = vadd.f32 %v289, %v373
    %v375 = vpop.f32.mrf.mxu0
    %376 = vmatprep.mubr.f32.mxu0 0.0
    %377 = vmatmul.mubr.f32.gmra.mxu0 %v301
    %v378 = vpop.f32.mrf.mxu0
    %v379 = vadd.f32 %v290, %v378
    %v380 = vpop.f32.mrf.mxu0
    %381 = vdwg.mxu0
    %v382 = vld [vmem:[%s1] sm:$0x1]
    %v383 = vsub.f32 %v382, 1.0
    %v384 = vmul.f32 %v383, 1e+09
    %v386 = vlaneseq
    %v387 = vshrl.u32 %v386, 7
    %v388 = vsub.s32 0, %v387
    %v389 = vrot.slane %v384, %v388
    %v391 = vadd.f32 %v374, %v389
    %v392 = vadd.f32 %v379, %v389
    %vm393 = vcmask 130048
    %v394 = vsel %vm393, %v391, -inf
    %395 = vmax.xlane.f32.xlu0 %v394
    %v396 = vpop.xlane.xlu0 %395
    %v397 = vsel %vm393, %v392, -inf
    %398 = vmax.xlane.f32.xlu0 %v397
    %v399 = vpop.xlane.xlu0 %398
    %v400 = vsub.f32 %v391, %v396
    %v401 = vsub.f32 %v392, %v399
    %v402 = vmul.f32 %v400, 1.442695
    %v403 = vpow.pop %v402
    %v404 = vmul.f32 %v401, 1.442695
    %v405 = vpow.pop %v404
    %v406 = vsel %vm393, %v403, 0.0
    %407 = vadd.xlane.f32.xlu0 %v406
    %v408 = vpop.xlane.xlu0 %407
    %v409 = vsel %vm393, %v405, 0.0
    %410 = vadd.xlane.f32.xlu0 %v409
    %v411 = vpop.xlane.xlu0 %410
    %v412 = vrcp.pop %v408
    %v413 = vrcp.pop %v411
    %v414 = vmul.f32 %v403, %v412
    %v415 = vmul.f32 %v405, %v413
    %418 = vrot.lane.b32.xlu0 %v287, 64
    %v419 = vpop.permute.xlu0 %418
    %420 = vrot.lane.b32.xlu0 %v288, 64
    %v421 = vpop.permute.xlu0 %420
    %v425 = vsel %vm393, %v414, 0
    %v428 = vsel %vm393, %v415, 0
    %430 = vmatprep.subr.mxu0 0.0
    %431 = vmatpush1.msra.mxu0 0.0
    %432 = vmatprep.subr.mxu0 0.0
    %433 = vmatpush1.msra.mxu0 0.0
    %434 = vmatprep.subr.mxu0 0.0
    %435 = vmatpush1.msra.mxu0 0.0
    %436 = vmatprep.subr.mxu0 0.0
    %437 = vmatpush1.msra.mxu0 0.0
    %438 = vmatprep.subr.mxu0 0.0
    %439 = vmatpush1.msra.mxu0 0.0
    %440 = vmatprep.subr.mxu0 0.0
    %441 = vmatpush1.msra.mxu0 0.0
    %442 = vmatprep.subr.mxu0 0.0
    %443 = vmatpush1.msra.mxu0 0.0
    %444 = vmatprep.subr.mxu0 0.0
    %445 = vmatpush1.msra.mxu0 0.0
    %446 = vmatprep.subr.mxu0 0.0
    %447 = vmatpush1.msra.mxu0 0.0
    %448 = vmatprep.subr.mxu0 0.0
    %449 = vmatpush1.msra.mxu0 0.0
    %450 = vmatprep.subr.mxu0 0.0
    %451 = vmatpush1.msra.mxu0 0.0
    %452 = vmatprep.subr.mxu0 0.0
    %453 = vmatpush1.msra.mxu0 0.0
    %454 = vmatprep.subr.mxu0 0.0
    %455 = vmatpush1.msra.mxu0 0.0
    %456 = vmatprep.subr.mxu0 0.0
    %457 = vmatpush1.msra.mxu0 0.0
    %458 = vmatprep.subr.mxu0 0.0
    %459 = vmatpush1.msra.mxu0 %v421
    %460 = vmatprep.subr.mxu0 0.0
    %461 = vmatpush1.msra.mxu0 %v419
    %462 = vmatprep.subr.mxu0 0.0
    %463 = vmatpush2.msra.mxu0 0.0
    %464 = vmatprep.subr.mxu0 0.0
    %465 = vmatpush2.msra.mxu0 0.0
    %466 = vmatprep.subr.mxu0 0.0
    %467 = vmatpush2.msra.mxu0 0.0
    %468 = vmatprep.subr.mxu0 0.0
    %469 = vmatpush2.msra.mxu0 0.0
    %470 = vmatprep.subr.mxu0 0.0
    %471 = vmatpush2.msra.mxu0 0.0
    %472 = vmatprep.subr.mxu0 0.0
    %473 = vmatpush2.msra.mxu0 0.0
    %474 = vmatprep.subr.mxu0 0.0
    %475 = vmatpush2.msra.mxu0 0.0
    %476 = vmatprep.subr.mxu0 0.0
    %477 = vmatpush2.msra.mxu0 0.0
    %478 = vmatprep.subr.mxu0 0.0
    %479 = vmatpush2.msra.mxu0 0.0
    %480 = vmatprep.subr.mxu0 0.0
    %481 = vmatpush2.msra.mxu0 0.0
    %482 = vmatprep.subr.mxu0 0.0
    %483 = vmatpush2.msra.mxu0 0.0
    %484 = vmatprep.subr.mxu0 0.0
    %485 = vmatpush2.msra.mxu0 0.0
    %486 = vmatprep.subr.mxu0 0.0
    %487 = vmatpush2.msra.mxu0 0.0
    %488 = vmatprep.subr.mxu0 0.0
    %489 = vmatpush2.msra.mxu0 0.0
    %490 = vmatprep.subr.mxu0 0.0
    %491 = vmatpush2.msra.mxu0 0.0
    %492 = vmatprep.subr.mxu0 0.0
    %493 = vmatpush2.msra.mxu0 0.0
    %494 = vmatprep.mubr.f32.mxu0 0.0
    %495 = vmatmul.mubr.f32.gmra.mxu0 %v425
    %v496 = vpop.f32.mrf.mxu0
    %v497 = vadd.f32 0.0, %v496
    %v498 = vpop.f32.mrf.mxu0
    %499 = vmatprep.mubr.f32.mxu0 0.0
    %500 = vmatmul.mubr.f32.gmra.mxu0 %v428
    %v501 = vpop.f32.mrf.mxu0
    %v502 = vadd.f32 0.0, %v501
    %v503 = vpop.f32.mrf.mxu0
    %504 = vdwg.mxu0
    %v505 = vpack.c.bf16 %v502, %v497
    %v506 = vld [vmem:[%s5] sm:$0xf]
    %v507 = vld [vmem:[%s5 + $0x4] sm:$0xf]
    %v508 = vld [vmem:[%s5 + $0x8] sm:$0xf]
    %v509 = vld [vmem:[%s5 + $0xc] sm:$0xf]
    %s510 = scalar_lea.vmem %s8, 48
    %v511 = vld [vmem:[%s510] sm:$0xff]
    %v512 = vld [vmem:[%s510 + $0x8] sm:$0xff]
    %v517 = vunpack.c.l.b16 %v506
    %v518 = vunpack.c.l.b16 %v507
    %v519 = vunpack.c.l.b16 %v508
    %v520 = vunpack.c.l.b16 %v509
    %v521 = vpack.c.b16 %v518, %v517
    %v522 = vpack.c.b16 %v520, %v519
    %v526 = vsel %vm214, %v505, 0
    %528 = vmatprep.subr.bf16.mxu0 0
    %529 = vmatpush1.bf16.msra.mxu0 0
    %530 = vmatprep.subr.bf16.mxu0 0
    %531 = vmatpush1.bf16.msra.mxu0 0
    %532 = vmatprep.subr.bf16.mxu0 0
    %533 = vmatpush1.bf16.msra.mxu0 0
    %534 = vmatprep.subr.bf16.mxu0 0
    %535 = vmatpush1.bf16.msra.mxu0 0
    %536 = vmatprep.subr.bf16.mxu0 0
    %537 = vmatpush1.bf16.msra.mxu0 0
    %538 = vmatprep.subr.bf16.mxu0 0
    %539 = vmatpush1.bf16.msra.mxu0 0
    %540 = vmatprep.subr.bf16.mxu0 0
    %541 = vmatpush1.bf16.msra.mxu0 %v522
    %542 = vmatprep.subr.bf16.mxu0 0
    %543 = vmatpush1.bf16.msra.mxu0 %v521
    %544 = vmatprep.subr.bf16.mxu0 0
    %545 = vmatpush2.bf16.msra.mxu0 0
    %546 = vmatprep.subr.bf16.mxu0 0
    %547 = vmatpush2.bf16.msra.mxu0 0
    %548 = vmatprep.subr.bf16.mxu0 0
    %549 = vmatpush2.bf16.msra.mxu0 0
    %550 = vmatprep.subr.bf16.mxu0 0
    %551 = vmatpush2.bf16.msra.mxu0 0
    %552 = vmatprep.subr.bf16.mxu0 0
    %553 = vmatpush2.bf16.msra.mxu0 0
    %554 = vmatprep.subr.bf16.mxu0 0
    %555 = vmatpush2.bf16.msra.mxu0 0
    %556 = vmatprep.subr.bf16.mxu0 0
    %557 = vmatpush2.bf16.msra.mxu0 0
    %558 = vmatprep.subr.bf16.mxu0 0
    %559 = vmatpush2.bf16.msra.mxu0 0
    %560 = vmatprep.mubr.bf16.mxu0 0
    %561 = vmatmul.mubr.bf16.gmra.mxu0 %v526
    %v562 = vpop.f32.mrf.mxu0
    %v563 = vadd.f32 %v511, %v562
    %v564 = vpop.f32.mrf.mxu0
    %v565 = vpop.f32.mrf.mxu0
    %v566 = vadd.f32 %v512, %v565
    %v567 = vpop.f32.mrf.mxu0
    %568 = vdwg.mxu0
    %v569 = vadd.f32 %v195, %v563
    %v570 = vadd.f32 %v196, %v566
    %s571 = scalar_lea.vmem %s8, 64
    %v572 = vld [vmem:[%s571] sm:$0xff]
    %v573 = vld [vmem:[%s571 + $0x8] sm:$0xff]
    %s574 = scalar_lea.vmem %s8, 80
    %v575 = vld [vmem:[%s574] sm:$0xff]
    %v576 = vld [vmem:[%s574 + $0x8] sm:$0xff]
    %v577 = vsel %vm214, %v569, 0.0
    %578 = vadd.xlane.f32.xlu0 %v577
    %v579 = vpop.xlane.xlu0 %578
    %v580 = vsel %vm214, %v570, 0.0
    %581 = vadd.xlane.f32.xlu0 %v580
    %v582 = vpop.xlane.xlu0 %581
    %v583 = vrcp.pop 32.0
    %v584 = vmul.f32 %v579, %v583
    %v585 = vmul.f32 %v582, %v583
    %v586 = vsub.f32 %v569, %v584
    %v587 = vsub.f32 %v570, %v585
    %v588 = vmul.f32 %v586, %v586
    %v589 = vmul.f32 %v587, %v587
    %v590 = vsel %vm214, %v588, 0.0
    %591 = vadd.xlane.f32.xlu0 %v590
    %v592 = vpop.xlane.xlu0 %591
    %v593 = vsel %vm214, %v589, 0.0
    %594 = vadd.xlane.f32.xlu0 %v593
    %v595 = vpop.xlane.xlu0 %594
    %v596 = vmul.f32 %v592, %v583
    %v597 = vmul.f32 %v595, %v583
    %v598 = vadd.f32 %v596, 1e-12
    %v599 = vadd.f32 %v597, 1e-12
    %v600 = vrsqrt.pop %v598
    %v601 = vrsqrt.pop %v599
    %v602 = vmul.f32 %v586, %v600
    %v603 = vmul.f32 %v587, %v601
    %v604 = vmul.f32 %v602, %v572
    %v605 = vmul.f32 %v603, %v573
    %v606 = vadd.f32 %v604, %v575
    %v607 = vadd.f32 %v605, %v576
    %v608 = vpack.c.bf16 %v607, %v606
    %v609 = vld [vmem:[#allocation6] sm:$0xf]
    %v610 = vld [vmem:[#allocation6 + $0x4] sm:$0xf]
    %v611 = vld [vmem:[#allocation6 + $0x8] sm:$0xf]
    %v612 = vld [vmem:[#allocation6 + $0xc] sm:$0xf]
    %v613 = vld [vmem:[#allocation7] sm:$0xff]
    %v614 = vld [vmem:[#allocation7 + $0x8] sm:$0xff]
    %v619 = vunpack.c.l.b16 %v609
    %v620 = vunpack.c.l.b16 %v610
    %v621 = vunpack.c.l.b16 %v611
    %v622 = vunpack.c.l.b16 %v612
    %v623 = vpack.c.b16 %v620, %v619
    %v624 = vpack.c.b16 %v622, %v621
    %v628 = vsel %vm214, %v608, 0
    %630 = vmatprep.subr.bf16.mxu0 0
    %631 = vmatpush1.bf16.msra.mxu0 0
    %632 = vmatprep.subr.bf16.mxu0 0
    %633 = vmatpush1.bf16.msra.mxu0 0
    %634 = vmatprep.subr.bf16.mxu0 0
    %635 = vmatpush1.bf16.msra.mxu0 0
    %636 = vmatprep.subr.bf16.mxu0 0
    %637 = vmatpush1.bf16.msra.mxu0 0
    %638 = vmatprep.subr.bf16.mxu0 0
    %639 = vmatpush1.bf16.msra.mxu0 0
    %640 = vmatprep.subr.bf16.mxu0 0
    %641 = vmatpush1.bf16.msra.mxu0 0
    %642 = vmatprep.subr.bf16.mxu0 0
    %643 = vmatpush1.bf16.msra.mxu0 %v624
    %644 = vmatprep.subr.bf16.mxu0 0
    %645 = vmatpush1.bf16.msra.mxu0 %v623
    %646 = vmatprep.subr.bf16.mxu0 0
    %647 = vmatpush2.bf16.msra.mxu0 0
    %648 = vmatprep.subr.bf16.mxu0 0
    %649 = vmatpush2.bf16.msra.mxu0 0
    %650 = vmatprep.subr.bf16.mxu0 0
    %651 = vmatpush2.bf16.msra.mxu0 0
    %652 = vmatprep.subr.bf16.mxu0 0
    %653 = vmatpush2.bf16.msra.mxu0 0
    %654 = vmatprep.subr.bf16.mxu0 0
    %655 = vmatpush2.bf16.msra.mxu0 0
    %656 = vmatprep.subr.bf16.mxu0 0
    %657 = vmatpush2.bf16.msra.mxu0 0
    %658 = vmatprep.subr.bf16.mxu0 0
    %659 = vmatpush2.bf16.msra.mxu0 0
    %660 = vmatprep.subr.bf16.mxu0 0
    %661 = vmatpush2.bf16.msra.mxu0 0
    %662 = vmatprep.mubr.bf16.mxu0 0
    %663 = vmatmul.mubr.bf16.gmra.mxu0 %v628
    %v664 = vpop.f32.mrf.mxu0
    %v665 = vadd.f32 %v613, %v664
    %v666 = vpop.f32.mrf.mxu0
    %v667 = vpop.f32.mrf.mxu0
    %v668 = vadd.f32 %v614, %v667
    %v669 = vpop.f32.mrf.mxu0
    %670 = vdwg.mxu0
    %v671 = vmul.f32 %v665, 0.5
    %v672 = vmul.f32 %v668, 0.5
    %v673 = vmul.f32 %v665, 0.044715
    %v674 = vmul.f32 %v668, 0.044715
    %v675 = vmul.f32 %v673, %v665
    %v676 = vmul.f32 %v674, %v668
    %v677 = vmul.f32 %v675, %v665
    %v678 = vmul.f32 %v676, %v668
    %v679 = vadd.f32 %v665, %v677
    %v680 = vadd.f32 %v668, %v678
    %v681 = vmul.f32 %v679, 0.7978846
    %v682 = vmul.f32 %v680, 0.7978846
    %v683 = vtanh.pop %v681
    %v684 = vtanh.pop %v682
    %v685 = vadd.f32 %v683, 1.0
    %v686 = vadd.f32 %v684, 1.0
    %v687 = vmul.f32 %v671, %v685
    %v688 = vmul.f32 %v672, %v686
    %v689 = vpack.c.bf16 %v688, %v687
    %v690 = vld [vmem:[%s7] sm:$0xf]
    %v691 = vld [vmem:[%s7 + $0x4] sm:$0xf]
    %v692 = vld [vmem:[%s7 + $0x8] sm:$0xf]
    %v693 = vld [vmem:[%s7 + $0xc] sm:$0xf]
    %v694 = vld [vmem:[%s7 + $0x10] sm:$0xf]
    %v695 = vld [vmem:[%s7 + $0x14] sm:$0xf]
    %v696 = vld [vmem:[%s7 + $0x18] sm:$0xf]
    %v697 = vld [vmem:[%s7 + $0x1c] sm:$0xf]
    %s698 = scalar_lea.vmem %s8, 96
    %v699 = vld [vmem:[%s698] sm:$0xff]
    %v700 = vld [vmem:[%s698 + $0x8] sm:$0xff]
    %v709 = vunpack.c.l.b16 %v690
    %v710 = vunpack.c.l.b16 %v691
    %v711 = vunpack.c.l.b16 %v692
    %v712 = vunpack.c.l.b16 %v693
    %v713 = vunpack.c.l.b16 %v694
    %v714 = vunpack.c.l.b16 %v695
    %v715 = vunpack.c.l.b16 %v696
    %v716 = vunpack.c.l.b16 %v697
    %v717 = vpack.c.b16 %v710, %v709
    %v718 = vpack.c.b16 %v712, %v711
    %v719 = vpack.c.b16 %v714, %v713
    %v720 = vpack.c.b16 %v716, %v715
    %vm725 = vcmask 523264
    %v727 = vsel %vm725, %v689, 0
    %729 = vmatprep.subr.bf16.mxu0 0
    %730 = vmatpush1.bf16.msra.mxu0 0
    %731 = vmatprep.subr.bf16.mxu0 0
    %732 = vmatpush1.bf16.msra.mxu0 0
    %733 = vmatprep.subr.bf16.mxu0 0
    %734 = vmatpush1.bf16.msra.mxu0 0
    %735 = vmatprep.subr.bf16.mxu0 0
    %736 = vmatpush1.bf16.msra.mxu0 0
    %737 = vmatprep.subr.bf16.mxu0 0
    %738 = vmatpush1.bf16.msra.mxu0 %v720
    %739 = vmatprep.subr.bf16.mxu0 0
    %740 = vmatpush1.bf16.msra.mxu0 %v719
    %741 = vmatprep.subr.bf16.mxu0 0
    %742 = vmatpush1.bf16.msra.mxu0 %v718
    %743 = vmatprep.subr.bf16.mxu0 0
    %744 = vmatpush1.bf16.msra.mxu0 %v717
    %745 = vmatprep.subr.bf16.mxu0 0
    %746 = vmatpush2.bf16.msra.mxu0 0
    %747 = vmatprep.subr.bf16.mxu0 0
    %748 = vmatpush2.bf16.msra.mxu0 0
    %749 = vmatprep.subr.bf16.mxu0 0
    %750 = vmatpush2.bf16.msra.mxu0 0
    %751 = vmatprep.subr.bf16.mxu0 0
    %752 = vmatpush2.bf16.msra.mxu0 0
    %753 = vmatprep.subr.bf16.mxu0 0
    %754 = vmatpush2.bf16.msra.mxu0 0
    %755 = vmatprep.subr.bf16.mxu0 0
    %756 = vmatpush2.bf16.msra.mxu0 0
    %757 = vmatprep.subr.bf16.mxu0 0
    %758 = vmatpush2.bf16.msra.mxu0 0
    %759 = vmatprep.subr.bf16.mxu0 0
    %760 = vmatpush2.bf16.msra.mxu0 0
    %761 = vmatprep.mubr.bf16.mxu0 0
    %762 = vmatmul.mubr.bf16.gmra.mxu0 %v727
    %v763 = vpop.f32.mrf.mxu0
    %v764 = vadd.f32 %v699, %v763
    %v765 = vpop.f32.mrf.mxu0
    %v766 = vpop.f32.mrf.mxu0
    %v767 = vadd.f32 %v700, %v766
    %v768 = vpop.f32.mrf.mxu0
    %769 = vdwg.mxu0
    %v770 = vadd.f32 %v606, %v764
    %v771 = vadd.f32 %v607, %v767
    %s772 = scalar_lea.vmem %s8, 112
    %v773 = vld [vmem:[%s772] sm:$0xff]
    %v774 = vld [vmem:[%s772 + $0x8] sm:$0xff]
    %s775 = scalar_lea.vmem %s8, 128
    %v776 = vld [vmem:[%s775] sm:$0xff]
    %v777 = vld [vmem:[%s775 + $0x8] sm:$0xff]
    %v778 = vsel %vm214, %v770, 0.0
    %779 = vadd.xlane.f32.xlu0 %v778
    %v780 = vpop.xlane.xlu0 %779
    %v781 = vsel %vm214, %v771, 0.0
    %782 = vadd.xlane.f32.xlu0 %v781
    %v783 = vpop.xlane.xlu0 %782
    %v784 = vmul.f32 %v780, %v583
    %v785 = vmul.f32 %v783, %v583
    %v786 = vsub.f32 %v770, %v784
    %v787 = vsub.f32 %v771, %v785
    %v788 = vmul.f32 %v786, %v786
    %v789 = vmul.f32 %v787, %v787
    %v790 = vsel %vm214, %v788, 0.0
    %791 = vadd.xlane.f32.xlu0 %v790
    %v792 = vpop.xlane.xlu0 %791
    %v793 = vsel %vm214, %v789, 0.0
    %794 = vadd.xlane.f32.xlu0 %v793
    %v795 = vpop.xlane.xlu0 %794
    %v796 = vmul.f32 %v792, %v583
    %v797 = vmul.f32 %v795, %v583
    %v798 = vadd.f32 %v796, 1e-12
    %v799 = vadd.f32 %v797, 1e-12
    %v800 = vrsqrt.pop %v798
    %v801 = vrsqrt.pop %v799
    %v802 = vmul.f32 %v786, %v800
    %v803 = vmul.f32 %v787, %v801
    %v804 = vmul.f32 %v802, %v773
    %v805 = vmul.f32 %v803, %v774
    %v806 = vadd.f32 %v804, %v776
    %v807 = vadd.f32 %v805, %v777
    %v808 = vpack.c.bf16 %v807, %v806
    %v809 = vld [vmem:[#allocation9] sm:$0xf]
    %v810 = vld [vmem:[#allocation9 + $0x4] sm:$0xf]
    %v811 = vld [vmem:[#allocation9 + $0x8] sm:$0xf]
    %v812 = vld [vmem:[#allocation9 + $0xc] sm:$0xf]
    %v813 = vld [vmem:[#allocation10] sm:$0xff]
    %v814 = vld [vmem:[#allocation10 + $0x8] sm:$0xff]
    %v819 = vunpack.c.l.b16 %v809
    %v820 = vunpack.c.l.b16 %v810
    %v821 = vunpack.c.l.b16 %v811
    %v822 = vunpack.c.l.b16 %v812
    %v823 = vpack.c.b16 %v820, %v819
    %v824 = vpack.c.b16 %v822, %v821
    %v828 = vsel %vm214, %v808, 0
    %830 = vmatprep.subr.bf16.mxu0 0
    %831 = vmatpush1.bf16.msra.mxu0 0
    %832 = vmatprep.subr.bf16.mxu0 0
    %833 = vmatpush1.bf16.msra.mxu0 0
    %834 = vmatprep.subr.bf16.mxu0 0
    %835 = vmatpush1.bf16.msra.mxu0 0
    %836 = vmatprep.subr.bf16.mxu0 0
    %837 = vmatpush1.bf16.msra.mxu0 0
    %838 = vmatprep.subr.bf16.mxu0 0
    %839 = vmatpush1.bf16.msra.mxu0 0
    %840 = vmatprep.subr.bf16.mxu0 0
    %841 = vmatpush1.bf16.msra.mxu0 0
    %842 = vmatprep.subr.bf16.mxu0 0
    %843 = vmatpush1.bf16.msra.mxu0 %v824
    %844 = vmatprep.subr.bf16.mxu0 0
    %845 = vmatpush1.bf16.msra.mxu0 %v823
    %846 = vmatprep.subr.bf16.mxu0 0
    %847 = vmatpush2.bf16.msra.mxu0 0
    %848 = vmatprep.subr.bf16.mxu0 0
    %849 = vmatpush2.bf16.msra.mxu0 0
    %850 = vmatprep.subr.bf16.mxu0 0
    %851 = vmatpush2.bf16.msra.mxu0 0
    %852 = vmatprep.subr.bf16.mxu0 0
    %853 = vmatpush2.bf16.msra.mxu0 0
    %854 = vmatprep.subr.bf16.mxu0 0
    %855 = vmatpush2.bf16.msra.mxu0 0
    %856 = vmatprep.subr.bf16.mxu0 0
    %857 = vmatpush2.bf16.msra.mxu0 0
    %858 = vmatprep.subr.bf16.mxu0 0
    %859 = vmatpush2.bf16.msra.mxu0 0
    %860 = vmatprep.subr.bf16.mxu0 0
    %861 = vmatpush2.bf16.msra.mxu0 0
    %862 = vmatprep.mubr.bf16.mxu0 0
    %863 = vmatmul.mubr.bf16.gmra.mxu0 %v828
    %v864 = vpop.f32.mrf.mxu0
    %v865 = vadd.f32 %v813, %v864
    %v866 = vpop.f32.mrf.mxu0
    %v867 = vpop.f32.mrf.mxu0
    %v868 = vadd.f32 %v814, %v867
    %v869 = vpop.f32.mrf.mxu0
    %870 = vdwg.mxu0
    %871 = vst [vmem:[%s13] sm:$0xff] %v865
    %872 = vst [vmem:[%s13 + $0x8] sm:$0xff] %v868
    // Predicated region
    $region78: #{multi_task_forward.1} parent=1 // pred_check
      _
    $region79: #{multi_task_forward.1} parent=1 // pred_check_branch
      %874 = sbr.rel (0) target = $region81
    $region80: #{multi_task_forward.1} parent=1 // pred_region
      _
    $region81: #{multi_task_forward.1} parent=1 // pred_fallthru
      _
    // Predicated region
    $region82: #{multi_task_forward.1} parent=1 // pred_check
      _
    $region83: #{multi_task_forward.1} parent=1 // pred_check_branch
      %876 = sbr.rel (0) target = $region85
    $region84: #{multi_task_forward.1} parent=1 // pred_region
      _
    $region85: #{multi_task_forward.1} parent=1 // pred_fallthru
      _
    %877 = vsyncpa [#allocation4], 1
    %878 = vsyncpa [#allocation8], 1
    %879 = vsyncpa [#allocation11], 1
    %880 = vsyncpa [#allocation5], 1

</llo_original>
